<compile_context>
chip_gen: v7x
topology: tpu7x:2x2x1
jax: 0.10.0
libtpu: 0.0.40
codegen_flags: <defaults>
</compile_context>

<pallas_src>
import jax
import jax.numpy as jnp
from jax.experimental import pallas as pl
from jax.experimental.pallas import tpu as pltpu


def _wlp_kernel(w_ref, *refs):
    """refs = (x_0, ..., x_{L-1}, out); each is one (tile_rows, tile_cols) tile.

    w_ref holds the pre-normalized layer weights in SMEM, so the body is a
    plain unrolled weighted sum (pure VPU work on an HBM-bound kernel).
    """
    x_refs, o_ref = refs[:-1], refs[-1]
    acc = x_refs[0][...].astype(jnp.float32) * w_ref[0]
    for i in range(1, len(x_refs)):
        acc = acc + x_refs[i][...].astype(jnp.float32) * w_ref[i]
    o_ref[...] = acc.astype(o_ref.dtype)


def _pick_layout(shape):
    """Flatten to a lane-dense 2-D [rows, cols] (cols % 128 == 0 when possible)."""
    total = 1
    for d in shape:
        total *= d
    h = shape[-1]
    if h % 128 == 0:
        return total // h, h
    for c in (1024, 512, 256, 128):
        if total % c == 0:
            return total // c, c
    # Lane-sparse fallback: output stores become masked vst.msk (perf cliff for
    # odd hidden sizes).  Prefer padding H at the model level, NOT padding the
    # L inputs here (that would add L extra HBM round-trips).
    return total // h, h


def _round_up(x, m):
    return ((x + m - 1) // m) * m


def _round_down(x, m):
    return (x // m) * m


def weighted_layer_pooling(all_hidden_states, layer_weights, layer_start=4,
                           out_dtype=None):
    """all_hidden_states: list/tuple of [B, S, H] arrays (len = num_hidden_layers+1).
    layer_weights: [num_hidden_layers + 1 - layer_start] array.
    out_dtype: None -> PyTorch promotion (f32); pass jnp.bfloat16 to halve writeback.
    Returns sum_l(w_l * x_l) / sum_l(w_l) over layers [layer_start:], shape [B, S, H].
    """
    layers = list(all_hidden_states)[layer_start:]     # pure Python slice, no copy
    num_layers = len(layers)
    full_shape = layers[0].shape
    assert layer_weights.shape == (num_layers,)

    rows, cols = _pick_layout(full_shape)
    in_dtype = layers[0].dtype
    in_itemsize = jnp.dtype(in_dtype).itemsize
    if out_dtype is None:
        # Match PyTorch promotion: f32 weights * bf16/f32 activations -> f32 output.
        out_dtype = jnp.promote_types(in_dtype, jnp.float32)
    out_itemsize = jnp.dtype(out_dtype).itemsize

    # Sublane alignment: 8 rows for 32-bit, 16 for 16-bit, 32 for 8-bit dtypes.
    sub = {1: 32, 2: 16}.get(in_itemsize, 8)

    # VMEM budget: double-buffered input tile per layer + double-buffered output.
    # 24 MiB of buffering + 48 MiB scoped limit fits every generation
    # (v7x physical VMEM is 64 MiB/TC; v5e/v6e have 128 MiB).
    budget_bytes = 24 * 1024 * 1024
    vmem_limit_bytes = 48 * 1024 * 1024
    bytes_per_elem = 2 * num_layers * in_itemsize + 2 * out_itemsize

    # Column tiling when even a `sub`-row block would exceed the budget
    # (big H and/or many layers).  Keeps tile_cols a multiple-of-128 divisor.
    tile_cols = cols
    if cols % 128 == 0:
        while tile_cols > 128 and sub * tile_cols * bytes_per_elem > budget_bytes:
            half = tile_cols // 2
            if half % 128 == 0 and cols % half == 0:
                tile_cols = half
            else:
                break
    col_grid = pl.cdiv(cols, tile_cols)

    # Rows per tile within budget.
    tile_rows = max(1, budget_bytes // (tile_cols * bytes_per_elem))
    tile_rows = min(tile_rows, rows)

    # Megacore: guarantee >= 2 grid steps (split rows ~in half) so
    # dimension_semantics=("parallel", ...) actually shards across the 2 TCs.
    if col_grid == 1 and rows > sub:
        tile_rows = min(tile_rows, _round_up(pl.cdiv(rows, 2), sub))

    if rows >= sub:
        tile_rows = max(sub, _round_down(tile_rows, sub))
    else:
        tile_rows = rows                               # full (tiny) array

    grid = (pl.cdiv(rows, tile_rows), col_grid)

    # Free, contiguous reshape of each layer to the lane-dense 2-D slab.
    xs2d = [x.reshape(rows, cols) for x in layers]

    # Pre-normalize weights so the kernel needs no final division.
    w = layer_weights.astype(jnp.float32)
    w = w / jnp.sum(w)

    tile_spec = pl.BlockSpec((tile_rows, tile_cols), lambda i, j: (i, j))
    grid_spec = pltpu.PrefetchScalarGridSpec(
        num_scalar_prefetch=0,
        grid=grid,
        in_specs=[pl.BlockSpec(memory_space=pltpu.MemorySpace.SMEM)]
                 + [tile_spec] * num_layers,
        out_specs=tile_spec,
    )

    n_elem = rows * cols
    cost = pl.CostEstimate(
        flops=2 * num_layers * n_elem,
        transcendentals=0,
        bytes_accessed=num_layers * n_elem * in_itemsize + n_elem * out_itemsize,
    )

    out2d = pl.pallas_call(
        _wlp_kernel,
        out_shape=jax.ShapeDtypeStruct((rows, cols), out_dtype),
        grid_spec=grid_spec,
        compiler_params=pltpu.CompilerParams(
            dimension_semantics=("parallel", "parallel"),
            vmem_limit_bytes=vmem_limit_bytes,
        ),
        cost_estimate=cost,
    )(w, *xs2d)

    return out2d.reshape(full_shape)


if __name__ == "__main__":
    # module config
    num_hidden_layers = 12
    layer_start = 4

    # deterministic parameter init, matching nn.Parameter(torch.tensor([1]*n, float))
    layer_weights = jnp.ones((num_hidden_layers + 1 - layer_start,), dtype=jnp.float32)

    # --- check 1: small f32 shapes (single grid step, lane-dense fallback slab) ---
    B, S, H = 2, 8, 32
    key = jax.random.PRNGKey(0)
    keys = jax.random.split(key, num_hidden_layers + 1)
    all_hidden_states = [
        jax.random.normal(k, (B, S, H), dtype=jnp.float32) for k in keys
    ]

    out = weighted_layer_pooling(all_hidden_states, layer_weights, layer_start)
    out = jax.block_until_ready(out)

    x = jnp.stack(all_hidden_states, axis=0)[layer_start:]
    ref = (layer_weights[:, None, None, None] * x).sum(axis=0) / layer_weights.sum()

    assert out.shape == (B, S, H), out.shape
    assert out.dtype == jnp.float32, out.dtype
    assert jnp.allclose(out, ref, atol=1e-5, rtol=1e-5), float(jnp.abs(out - ref).max())

    # --- check 2: bf16 inputs, H=128 -> exercises the 2-step (megacore-sharded)
    # grid and 16-row sublane alignment; output stays f32 (PyTorch promotion). ---
    B2, S2, H2 = 2, 64, 128
    keys2 = jax.random.split(jax.random.PRNGKey(1), num_hidden_layers + 1)
    hs_bf16 = [
        jax.random.normal(k, (B2, S2, H2), dtype=jnp.float32).astype(jnp.bfloat16)
        for k in keys2
    ]
    out2 = weighted_layer_pooling(hs_bf16, layer_weights, layer_start)
    out2 = jax.block_until_ready(out2)

    x2 = jnp.stack(hs_bf16, axis=0)[layer_start:].astype(jnp.float32)
    ref2 = (layer_weights[:, None, None, None] * x2).sum(axis=0) / layer_weights.sum()
    assert out2.shape == (B2, S2, H2), out2.shape
    assert out2.dtype == jnp.float32, out2.dtype
    assert jnp.allclose(out2, ref2, atol=1e-4, rtol=1e-4), float(jnp.abs(out2 - ref2).max())

    print("KERNEL_OK")
</pallas_src>

<mosaic_0001>
module attributes {stable_mosaic.version = 11 : i64} {
  func.func @_wlp_kernel(%arg0: i32, %arg1: i32, %arg2: memref<9xf32, #tpu.memory_space<smem>>, %arg3: memref<1x512xf32, #tpu.memory_space<vmem>>, %arg4: memref<1x512xf32, #tpu.memory_space<vmem>>, %arg5: memref<1x512xf32, #tpu.memory_space<vmem>>, %arg6: memref<1x512xf32, #tpu.memory_space<vmem>>, %arg7: memref<1x512xf32, #tpu.memory_space<vmem>>, %arg8: memref<1x512xf32, #tpu.memory_space<vmem>>, %arg9: memref<1x512xf32, #tpu.memory_space<vmem>>, %arg10: memref<1x512xf32, #tpu.memory_space<vmem>>, %arg11: memref<1x512xf32, #tpu.memory_space<vmem>>, %arg12: memref<1x512xf32, #tpu.memory_space<vmem>>) attributes {dimension_semantics = [#tpu.dimension_semantics<parallel>, #tpu.dimension_semantics<parallel>], iteration_bounds = array<i64: 1, 1>, scalar_prefetch = 0 : i64, scratch_operands = 0 : i64, tpu.core_type = #tpu.core_type<tc>, window_params = [{transform_indices = @transform_0, window_bounds = array<i64: 9>}, {transform_indices = @transform_1, window_bounds = array<i64: 1, 512>}, {transform_indices = @transform_2, window_bounds = array<i64: 1, 512>}, {transform_indices = @transform_3, window_bounds = array<i64: 1, 512>}, {transform_indices = @transform_4, window_bounds = array<i64: 1, 512>}, {transform_indices = @transform_5, window_bounds = array<i64: 1, 512>}, {transform_indices = @transform_6, window_bounds = array<i64: 1, 512>}, {transform_indices = @transform_7, window_bounds = array<i64: 1, 512>}, {transform_indices = @transform_8, window_bounds = array<i64: 1, 512>}, {transform_indices = @transform_9, window_bounds = array<i64: 1, 512>}, {transform_indices = @transform_10, window_bounds = array<i64: 1, 512>}]} {
    %c0 = arith.constant 0 : index
    %c0_0 = arith.constant 0 : index
    %0 = vector.load %arg3[%c0, %c0_0] : memref<1x512xf32, #tpu.memory_space<vmem>>, vector<1x512xf32>
    %c0_1 = arith.constant 0 : index
    %1 = memref.load %arg2[%c0_1] : memref<9xf32, #tpu.memory_space<smem>>
    %2 = vector.broadcast %1 : f32 to vector<1x512xf32>
    %3 = arith.mulf %0, %2 : vector<1x512xf32>
    %c0_2 = arith.constant 0 : index
    %c0_3 = arith.constant 0 : index
    %4 = vector.load %arg4[%c0_2, %c0_3] : memref<1x512xf32, #tpu.memory_space<vmem>>, vector<1x512xf32>
    %c1 = arith.constant 1 : index
    %5 = memref.load %arg2[%c1] : memref<9xf32, #tpu.memory_space<smem>>
    %6 = vector.broadcast %5 : f32 to vector<1x512xf32>
    %7 = arith.mulf %4, %6 : vector<1x512xf32>
    %8 = arith.addf %3, %7 : vector<1x512xf32>
    %c0_4 = arith.constant 0 : index
    %c0_5 = arith.constant 0 : index
    %9 = vector.load %arg5[%c0_4, %c0_5] : memref<1x512xf32, #tpu.memory_space<vmem>>, vector<1x512xf32>
    %c2 = arith.constant 2 : index
    %10 = memref.load %arg2[%c2] : memref<9xf32, #tpu.memory_space<smem>>
    %11 = vector.broadcast %10 : f32 to vector<1x512xf32>
    %12 = arith.mulf %9, %11 : vector<1x512xf32>
    %13 = arith.addf %8, %12 : vector<1x512xf32>
    %c0_6 = arith.constant 0 : index
    %c0_7 = arith.constant 0 : index
    %14 = vector.load %arg6[%c0_6, %c0_7] : memref<1x512xf32, #tpu.memory_space<vmem>>, vector<1x512xf32>
    %c3 = arith.constant 3 : index
    %15 = memref.load %arg2[%c3] : memref<9xf32, #tpu.memory_space<smem>>
    %16 = vector.broadcast %15 : f32 to vector<1x512xf32>
    %17 = arith.mulf %14, %16 : vector<1x512xf32>
    %18 = arith.addf %13, %17 : vector<1x512xf32>
    %c0_8 = arith.constant 0 : index
    %c0_9 = arith.constant 0 : index
    %19 = vector.load %arg7[%c0_8, %c0_9] : memref<1x512xf32, #tpu.memory_space<vmem>>, vector<1x512xf32>
    %c4 = arith.constant 4 : index
    %20 = memref.load %arg2[%c4] : memref<9xf32, #tpu.memory_space<smem>>
    %21 = vector.broadcast %20 : f32 to vector<1x512xf32>
    %22 = arith.mulf %19, %21 : vector<1x512xf32>
    %23 = arith.addf %18, %22 : vector<1x512xf32>
    %c0_10 = arith.constant 0 : index
    %c0_11 = arith.constant 0 : index
    %24 = vector.load %arg8[%c0_10, %c0_11] : memref<1x512xf32, #tpu.memory_space<vmem>>, vector<1x512xf32>
    %c5 = arith.constant 5 : index
    %25 = memref.load %arg2[%c5] : memref<9xf32, #tpu.memory_space<smem>>
    %26 = vector.broadcast %25 : f32 to vector<1x512xf32>
    %27 = arith.mulf %24, %26 : vector<1x512xf32>
    %28 = arith.addf %23, %27 : vector<1x512xf32>
    %c0_12 = arith.constant 0 : index
    %c0_13 = arith.constant 0 : index
    %29 = vector.load %arg9[%c0_12, %c0_13] : memref<1x512xf32, #tpu.memory_space<vmem>>, vector<1x512xf32>
    %c6 = arith.constant 6 : index
    %30 = memref.load %arg2[%c6] : memref<9xf32, #tpu.memory_space<smem>>
    %31 = vector.broadcast %30 : f32 to vector<1x512xf32>
    %32 = arith.mulf %29, %31 : vector<1x512xf32>
    %33 = arith.addf %28, %32 : vector<1x512xf32>
    %c0_14 = arith.constant 0 : index
    %c0_15 = arith.constant 0 : index
    %34 = vector.load %arg10[%c0_14, %c0_15] : memref<1x512xf32, #tpu.memory_space<vmem>>, vector<1x512xf32>
    %c7 = arith.constant 7 : index
    %35 = memref.load %arg2[%c7] : memref<9xf32, #tpu.memory_space<smem>>
    %36 = vector.broadcast %35 : f32 to vector<1x512xf32>
    %37 = arith.mulf %34, %36 : vector<1x512xf32>
    %38 = arith.addf %33, %37 : vector<1x512xf32>
    %c0_16 = arith.constant 0 : index
    %c0_17 = arith.constant 0 : index
    %39 = vector.load %arg11[%c0_16, %c0_17] : memref<1x512xf32, #tpu.memory_space<vmem>>, vector<1x512xf32>
    %c8 = arith.constant 8 : index
    %40 = memref.load %arg2[%c8] : memref<9xf32, #tpu.memory_space<smem>>
    %41 = vector.broadcast %40 : f32 to vector<1x512xf32>
    %42 = arith.mulf %39, %41 : vector<1x512xf32>
    %43 = arith.addf %38, %42 : vector<1x512xf32>
    %c0_18 = arith.constant 0 : index
    %c0_19 = arith.constant 0 : index
    %44 = vector.load %arg12[%c0_18, %c0_19] : memref<1x512xf32, #tpu.memory_space<vmem>>, vector<1x512xf32>
    tpu.vector_store %arg12[%c0_18, %c0_19], %43 {strides = array<i32>} : memref<1x512xf32, #tpu.memory_space<vmem>>, vector<1x512xf32>,
    return
  }
  func.func @transform_0(%arg0: i32, %arg1: i32) -> i32 {
    %c0_i32 = arith.constant 0 : i32
    %c0_i32_0 = arith.constant 0 : i32
    return %c0_i32 : i32
  }
  func.func @transform_1(%arg0: i32, %arg1: i32) -> (i32, i32) {
    %c0_i32 = arith.constant 0 : i32
    return %arg0, %arg1 : i32, i32
  }
  func.func @transform_2(%arg0: i32, %arg1: i32) -> (i32, i32) {
    %c0_i32 = arith.constant 0 : i32
    return %arg0, %arg1 : i32, i32
  }
  func.func @transform_3(%arg0: i32, %arg1: i32) -> (i32, i32) {
    %c0_i32 = arith.constant 0 : i32
    return %arg0, %arg1 : i32, i32
  }
  func.func @transform_4(%arg0: i32, %arg1: i32) -> (i32, i32) {
    %c0_i32 = arith.constant 0 : i32
    return %arg0, %arg1 : i32, i32
  }
  func.func @transform_5(%arg0: i32, %arg1: i32) -> (i32, i32) {
    %c0_i32 = arith.constant 0 : i32
    return %arg0, %arg1 : i32, i32
  }
  func.func @transform_6(%arg0: i32, %arg1: i32) -> (i32, i32) {
    %c0_i32 = arith.constant 0 : i32
    return %arg0, %arg1 : i32, i32
  }
  func.func @transform_7(%arg0: i32, %arg1: i32) -> (i32, i32) {
    %c0_i32 = arith.constant 0 : i32
    return %arg0, %arg1 : i32, i32
  }
  func.func @transform_8(%arg0: i32, %arg1: i32) -> (i32, i32) {
    %c0_i32 = arith.constant 0 : i32
    return %arg0, %arg1 : i32, i32
  }
  func.func @transform_9(%arg0: i32, %arg1: i32) -> (i32, i32) {
    %c0_i32 = arith.constant 0 : i32
    return %arg0, %arg1 : i32, i32
  }
  func.func @transform_10(%arg0: i32, %arg1: i32) -> (i32, i32) {
    %c0_i32 = arith.constant 0 : i32
    return %arg0, %arg1 : i32, i32
  }
}

</mosaic_0001>

<llo_original>
// kernel: tpu_custom_call.1
$region0: #{tpu_custom_call.1}
  #allocation0 [shape = 'u32[]', space=smem, size = 0x4, offset = 0x4, fixed_abs, tag = 'smem constant byte address 0x4 - core index']
  #allocation1 [shape = 'u32[144,128]{1,0:T(1,128)}', space=vmem, size = 0x12000, scoped, tag = 'internal scratch']
  %s0 = inlined_call_operand.hbm [shape: f32[9], index: 0, kind: input, shape index: {}]
  %s1 = inlined_call_operand.hbm [shape: f32[1,512], index: 1, kind: input, shape index: {}]
  %s2 = inlined_call_operand.vmem [shape: f32[1,512], index: 2, kind: input, shape index: {}]
  %s3 = inlined_call_operand.vmem [shape: f32[1,512], index: 3, kind: input, shape index: {}]
  %s4 = inlined_call_operand.vmem [shape: f32[1,512], index: 4, kind: input, shape index: {}]
  %s5 = inlined_call_operand.vmem [shape: f32[1,512], index: 5, kind: input, shape index: {}]
  %s6 = inlined_call_operand.vmem [shape: f32[1,512], index: 6, kind: input, shape index: {}]
  %s7 = inlined_call_operand.vmem [shape: f32[1,512], index: 7, kind: input, shape index: {}]
  %s8 = inlined_call_operand.vmem [shape: f32[1,512], index: 8, kind: input, shape index: {}]
  %s9 = inlined_call_operand.vmem [shape: f32[1,512], index: 9, kind: input, shape index: {}]
  %s10 = inlined_call_operand.hbm [shape: f32[1,512], index: 10, kind: output, shape index: {}]
  %s11 = sld [smem:[#allocation0]]
  $region58: #{tpu_custom_call.1} parent=0
    _
  %s13 = ssub.s32 1, %s11
  %s14 = scalar_select 0, %s13, %s11
  $region1: #{tpu_custom_call.1} parent=0
    #allocation2 [shape = 'u8[512]{0}', space=smem, size = 0x200, scoped, tag = 'input window, operand 0, single buffered']
    #allocation3 [shape = 's32[1]{0}', space=sflag, size = 0x4, scoped, tag = 'scoped memory for tpu_custom_call.1']
    #allocation4 [shape = 's32[1]{0}', space=sflag, size = 0x4, scoped, tag = 'scoped memory for tpu_custom_call.1']
    #allocation5 [shape = 's32[1]{0}', space=sflag, size = 0x4, scoped, tag = 'scoped memory for tpu_custom_call.1']
    #allocation6 [shape = 'u8[2048]{0}', space=vmem, size = 0x800, scoped, tag = 'input window, operand 1, single buffered']
    #allocation7 [shape = 'u8[2048]{0}', space=vmem, size = 0x800, scoped, tag = 'output window, operand 0, single buffered']
    %15 = vsyncpa [#allocation5], 0
    %16 = vsyncpa [#allocation3], 0
    %17 = vsyncpa [#allocation4], 0
    // Predicated region
    $region2: #{tpu_custom_call.1} parent=1 // pred_check
      _
    $region3: #{tpu_custom_call.1} parent=1 // pred_check_branch
      %19 = sbr.rel (0) target = $region5
    $region4: #{tpu_custom_call.1} parent=1 // pred_region
      %s21 = ssub.s32 16, 16
      %22 = vsyncadd [#allocation5], %s21
      %25 = dma.hbm_to_smem %s0, 16, [#allocation2], [#allocation5]
    $region5: #{tpu_custom_call.1} parent=1 // pred_fallthru
      _
    // Predicated region
    $region6: #{tpu_custom_call.1} parent=1 // pred_check
      _
    $region7: #{tpu_custom_call.1} parent=1 // pred_check_branch
      %27 = sbr.rel (0) target = $region9
    $region8: #{tpu_custom_call.1} parent=1 // pred_region
      %s29 = ssub.s32 64, 64
      %30 = vsyncadd [#allocation3], %s29
      %s32 = sshll.u32 [#allocation6], 4
      %s33 = int_to_ptr.vmem [resolvable:$true] %s32
      %35 = dma.hbm_to_vmem [thread:$0]  %s1, 64, %s33, [#allocation3]
    $region9: #{tpu_custom_call.1} parent=1 // pred_fallthru
      _
    // Predicated region
    $region10: #{tpu_custom_call.1} parent=1 // pred_check
      _
    $region11: #{tpu_custom_call.1} parent=1 // pred_check_branch
      %37 = sbr.rel (0) target = $region13
    $region12: #{tpu_custom_call.1} parent=1 // pred_region
      _
    $region13: #{tpu_custom_call.1} parent=1 // pred_fallthru
      _
    // Predicated region
    $region14: #{tpu_custom_call.1} parent=1 // pred_check
      _
    $region15: #{tpu_custom_call.1} parent=1 // pred_check_branch
      %39 = sbr.rel (0) target = $region17
    $region16: #{tpu_custom_call.1} parent=1 // pred_region
      _
    $region17: #{tpu_custom_call.1} parent=1 // pred_fallthru
      _
    // Predicated region
    $region18: #{tpu_custom_call.1} parent=1 // pred_check
      _
    $region19: #{tpu_custom_call.1} parent=1 // pred_check_branch
      %41 = sbr.rel (0) target = $region21
    $region20: #{tpu_custom_call.1} parent=1 // pred_region
      _
    $region21: #{tpu_custom_call.1} parent=1 // pred_fallthru
      _
    // Predicated region
    $region22: #{tpu_custom_call.1} parent=1 // pred_check
      _
    $region23: #{tpu_custom_call.1} parent=1 // pred_check_branch
      %43 = sbr.rel (0) target = $region25
    $region24: #{tpu_custom_call.1} parent=1 // pred_region
      _
    $region25: #{tpu_custom_call.1} parent=1 // pred_fallthru
      _
    // Predicated region
    $region26: #{tpu_custom_call.1} parent=1 // pred_check
      _
    $region27: #{tpu_custom_call.1} parent=1 // pred_check_branch
      %45 = sbr.rel (0) target = $region29
    $region28: #{tpu_custom_call.1} parent=1 // pred_region
      _
    $region29: #{tpu_custom_call.1} parent=1 // pred_fallthru
      _
    // Predicated region
    $region30: #{tpu_custom_call.1} parent=1 // pred_check
      _
    $region31: #{tpu_custom_call.1} parent=1 // pred_check_branch
      %47 = sbr.rel (0) target = $region33
    $region32: #{tpu_custom_call.1} parent=1 // pred_region
      _
    $region33: #{tpu_custom_call.1} parent=1 // pred_fallthru
      _
    // Predicated region
    $region34: #{tpu_custom_call.1} parent=1 // pred_check
      _
    $region35: #{tpu_custom_call.1} parent=1 // pred_check_branch
      %49 = sbr.rel (0) target = $region37
    $region36: #{tpu_custom_call.1} parent=1 // pred_region
      _
    $region37: #{tpu_custom_call.1} parent=1 // pred_fallthru
      _
    // Predicated region
    $region38: #{tpu_custom_call.1} parent=1 // pred_check
      _
    $region39: #{tpu_custom_call.1} parent=1 // pred_check_branch
      %51 = sbr.rel (0) target = $region41
    $region40: #{tpu_custom_call.1} parent=1 // pred_region
      _
    $region41: #{tpu_custom_call.1} parent=1 // pred_fallthru
      _
    // Predicated region
    $region42: #{tpu_custom_call.1} parent=1 // pred_check
      _
    $region43: #{tpu_custom_call.1} parent=1 // pred_check_branch
      %53 = sbr.rel (0) target = $region45
    $region44: #{tpu_custom_call.1} parent=1 // pred_region
      %54 = dma.done [#allocation5], 16
    $region45: #{tpu_custom_call.1} parent=1 // pred_fallthru
      _
    // Predicated region
    $region46: #{tpu_custom_call.1} parent=1 // pred_check
      _
    $region47: #{tpu_custom_call.1} parent=1 // pred_check_branch
      %56 = sbr.rel (0) target = $region49
    $region48: #{tpu_custom_call.1} parent=1 // pred_region
      %57 = dma.done [#allocation3], 64
    $region49: #{tpu_custom_call.1} parent=1 // pred_fallthru
      _
    %58 = sfence
    %v59 = vld [vmem:[#allocation6] sm:$0xf]
    %s60 = sld [smem:[#allocation2]]
    %v61 = vstv %s60
    %v62 = vmul.f32 %v59, %v61
    %v63 = vld [vmem:[%s2] sm:$0xf]
    %s64 = sld [smem:[#allocation2 + $0x1]]
    %v65 = vstv %s64
    %v66 = vmul.f32 %v63, %v65
    %v67 = vadd.f32 %v62, %v66
    %v68 = vld [vmem:[%s3] sm:$0xf]
    %s69 = sld [smem:[#allocation2 + $0x2]]
    %v70 = vstv %s69
    %v71 = vmul.f32 %v68, %v70
    %v72 = vadd.f32 %v67, %v71
    %v73 = vld [vmem:[%s4] sm:$0xf]
    %s74 = sld [smem:[#allocation2 + $0x3]]
    %v75 = vstv %s74
    %v76 = vmul.f32 %v73, %v75
    %v77 = vadd.f32 %v72, %v76
    %v78 = vld [vmem:[%s5] sm:$0xf]
    %s79 = sld [smem:[#allocation2 + $0x4]]
    %v80 = vstv %s79
    %v81 = vmul.f32 %v78, %v80
    %v82 = vadd.f32 %v77, %v81
    %v83 = vld [vmem:[%s6] sm:$0xf]
    %s84 = sld [smem:[#allocation2 + $0x5]]
    %v85 = vstv %s84
    %v86 = vmul.f32 %v83, %v85
    %v87 = vadd.f32 %v82, %v86
    %v88 = vld [vmem:[%s7] sm:$0xf]
    %s89 = sld [smem:[#allocation2 + $0x6]]
    %v90 = vstv %s89
    %v91 = vmul.f32 %v88, %v90
    %v92 = vadd.f32 %v87, %v91
    %v93 = vld [vmem:[%s8] sm:$0xf]
    %s94 = sld [smem:[#allocation2 + $0x7]]
    %v95 = vstv %s94
    %v96 = vmul.f32 %v93, %v95
    %v97 = vadd.f32 %v92, %v96
    %v98 = vld [vmem:[%s9] sm:$0xf]
    %s99 = sld [smem:[#allocation2 + $0x8]]
    %v100 = vstv %s99
    %v101 = vmul.f32 %v98, %v100
    %v102 = vadd.f32 %v97, %v101
    %v103 = vlaneseq
    %vm104 = vcmp.ge.s32.totalorder %v103, 0
    %vm105 = vcmp.lt.s32.totalorder %v103, 512
    %vm106 = vmand %vm104, %vm105
    %107 = vst.msk [vmem:[#allocation7] sm:$0xf] %vm106, %v102
    // Predicated region
    $region50: #{tpu_custom_call.1} parent=1 // pred_check
      _
    $region51: #{tpu_custom_call.1} parent=1 // pred_check_branch
      %109 = sbr.rel (0) target = $region53
    $region52: #{tpu_custom_call.1} parent=1 // pred_region
      %s111 = ssub.s32 64, 64
      %112 = vsyncadd [#allocation4], %s111
      %s114 = sshll.u32 [#allocation7], 4
      %s115 = int_to_ptr.vmem [resolvable:$true] %s114
      %117 = dma.vmem_to_hbm [thread:$0]  %s115, 64, %s10, [#allocation4]
    $region53: #{tpu_custom_call.1} parent=1 // pred_fallthru
      _
    // Predicated region
    $region54: #{tpu_custom_call.1} parent=1 // pred_check
      _
    $region55: #{tpu_custom_call.1} parent=1 // pred_check_branch
      %119 = sbr.rel (0) target = $region57
    $region56: #{tpu_custom_call.1} parent=1 // pred_region
      %120 = dma.done [#allocation4], 64
    $region57: #{tpu_custom_call.1} parent=1 // pred_fallthru
      _
    %121 = vsyncpa [#allocation3], 1
    %122 = vsyncpa [#allocation4], 1
    %123 = vsyncpa [#allocation5], 1

</llo_original>
